<compile_context>
chip_gen: v7x
topology: tpu7x:2x2x1
jax: 0.10.0
libtpu: 0.0.40
codegen_flags: <defaults>
</compile_context>

<pallas_src>
import functools

import jax
import jax.numpy as jnp
from jax.experimental import pallas as pl
from jax.experimental.pallas import tpu as pltpu


def _round_up(x, m):
    return ((x + m - 1) // m) * m


# ----------------------------- Pallas kernel --------------------------------
def _qcpo_kernel(
    obs_ref,                       # (tile_n, D_obs)  compute dtype
    mean_ref, inv_std_ref,         # (1, D_obs)       f32
    w1_ref, b1_ref,                # (D_obs, H), (1, H)
    w2_ref, b2_ref,                # (H, H), (1, H)
    wh_ref, bh_ref,                # (H, P_pad), (1, P_pad)  fused heads
    heads_ref,                     # (tile_n, P_pad)  f32 output slab
    *, a_dim, q_dim,
):
    cdtype = w1_ref.dtype

    # observation normalization: clip((obs - mean) * inv_std, -10, 10)  (inv_std precomputed)
    obs = obs_ref[...].astype(jnp.float32)
    x = jnp.clip((obs - mean_ref[...]) * inv_std_ref[...], -10.0, 10.0).astype(cdtype)

    # body MLP: Linear -> tanh -> Linear -> tanh   (MXU, f32 accumulation)
    h1 = jnp.tanh(
        jnp.dot(x, w1_ref[...], preferred_element_type=jnp.float32) + b1_ref[...]
    )
    h2 = jnp.tanh(
        jnp.dot(h1.astype(cdtype), w2_ref[...], preferred_element_type=jnp.float32)
        + b2_ref[...]
    )

    # single fused head matmul -> (tile_n, P_pad) pre-activations
    z = (
        jnp.dot(h2.astype(cdtype), wh_ref[...], preferred_element_type=jnp.float32)
        + bh_ref[...]
    )

    # per-column activations selected via iota masks (no lane shuffles / concats):
    #   [0, A)          : tanh      (mu)
    #   [A]             : identity  (r_value)
    #   [A+1, A+1+Q)    : exp       (c_dist)
    #   [A+1+Q]         : 4*sigmoid (c_w_alpha)
    #   [A+2+Q, ...)    : exp       (c_w_beta; padded cols harmlessly get exp(0)=1)
    col = jax.lax.broadcasted_iota(jnp.int32, z.shape, 1)
    t = jnp.tanh(z)
    e = jnp.exp(z)
    s = 4.0 * jax.nn.sigmoid(z)
    out = jnp.where(
        col < a_dim, t,
        jnp.where(
            col == a_dim, z,
            jnp.where(
                col < a_dim + 1 + q_dim, e,
                jnp.where(col == a_dim + 1 + q_dim, s, e),
            ),
        ),
    )
    heads_ref[...] = out


# ------------------------------ JAX wrapper ----------------------------------
def qcpo_forward(params, observation, prev_action=None, prev_reward=None, *,
                 tile_n=512, compute_dtype=jnp.bfloat16):
    """Forward pass of QcpoModel (no LSTM).  observation: (T, B, D_obs) float32."""
    T, B, D_obs = observation.shape
    N = T * B
    H = params["w1"].shape[1]
    A = params["wmu"].shape[1]
    Q = params["wc"].shape[1]
    P = A + Q + 3                      # mu(A) | r_value(1) | c_dist(Q) | c_w_alpha(1) | c_w_beta(1)
    P_pad = _round_up(P, 128)          # lane-dense output slab width

    # ---- row tiling: multiple of 8 sublanes, pad N up so the grid divides evenly ----
    tile_n = max(8, (int(tile_n) // 8) * 8)
    tile_n = min(tile_n, _round_up(N, 8))
    N_pad = _round_up(N, tile_n)
    grid = (N_pad // tile_n,)

    obs2d = observation.reshape(N, D_obs)
    if N_pad != N:
        obs2d = jnp.pad(obs2d, ((0, N_pad - N), (0, 0)))
    obs2d = obs2d.astype(compute_dtype)

    # normalization stats: fold the sqrt/divide into a single multiply inside the kernel
    mean = params["obs_mean"].astype(jnp.float32)
    inv_std = jax.lax.rsqrt(jnp.maximum(params["obs_var"], 1e-6)).astype(jnp.float32)

    w1 = params["w1"].astype(compute_dtype)
    b1 = params["b1"].astype(jnp.float32)
    w2 = params["w2"].astype(compute_dtype)
    b2 = params["b2"].astype(jnp.float32)

    # fuse the five head projections into one lane-dense (H, P_pad) weight
    w_heads = jnp.concatenate(
        [params["wmu"], params["wv"], params["wc"], params["wa"], params["wb"]], axis=1)
    b_heads = jnp.concatenate(
        [params["bmu"], params["bv"], params["bc"], params["ba"], params["bb"]], axis=1)
    if P_pad != P:
        w_heads = jnp.pad(w_heads, ((0, 0), (0, P_pad - P)))
        b_heads = jnp.pad(b_heads, ((0, 0), (0, P_pad - P)))
    w_heads = w_heads.astype(compute_dtype)
    b_heads = b_heads.astype(jnp.float32)

    in_arrays = [obs2d, mean, inv_std, w1, b1, w2, b2, w_heads, b_heads]

    row_spec = pl.BlockSpec((tile_n, D_obs), lambda i: (i, 0))

    def full_spec(a):
        return pl.BlockSpec(a.shape, lambda i: (0,) * a.ndim)

    in_specs = [row_spec] + [full_spec(a) for a in in_arrays[1:]]
    out_spec = pl.BlockSpec((tile_n, P_pad), lambda i: (i, 0))

    # advisory cost estimate (roofline documentation + XLA scheduling hint)
    flops = 2 * N_pad * (D_obs * H + H * H + H * P_pad)
    transcendentals = N_pad * (2 * H + 3 * P_pad)
    bytes_accessed = (
        sum(int(a.size) * a.dtype.itemsize for a in in_arrays)
        + N_pad * P_pad * 4
    )

    kernel = functools.partial(_qcpo_kernel, a_dim=A, q_dim=Q)

    heads = pl.pallas_call(
        kernel,
        out_shape=jax.ShapeDtypeStruct((N_pad, P_pad), jnp.float32),
        grid_spec=pltpu.PrefetchScalarGridSpec(
            num_scalar_prefetch=0,
            grid=grid,
            in_specs=in_specs,
            out_specs=out_spec,
        ),
        compiler_params=pltpu.CompilerParams(
            dimension_semantics=("parallel",),
            vmem_limit_bytes=32 * 1024 * 1024,  # safe on v5e/v6e/v7x; kernel uses far less
        ),
        cost_estimate=pl.CostEstimate(
            flops=flops,
            transcendentals=transcendentals,
            bytes_accessed=bytes_accessed,
        ),
    )(*in_arrays)

    # ---- split the lane-dense slab back into logical outputs (restore_leading_dims) ----
    heads = heads[:N]
    mu = heads[:, :A].reshape(T, B, A)
    r_value = heads[:, A].reshape(T, B)
    c_dist = heads[:, A + 1:A + 1 + Q].reshape(T, B, Q)
    c_w_alpha = heads[:, A + 1 + Q].reshape(T, B)
    c_w_beta = heads[:, A + 2 + Q].reshape(T, B)

    # log_std is a pure parameter broadcast (torch: log_std.repeat(T*B, 1)) -> done host-side
    log_std = jnp.broadcast_to(
        params["log_std"].reshape(1, 1, A).astype(jnp.float32), (T, B, A))

    value = {
        "r_value": r_value,
        "c_dist": c_dist,
        "c_w_alpha": c_w_alpha,
        "c_w_beta": c_w_beta,
    }
    return mu, log_std, value


# --------------------------- pure-JAX reference -------------------------------
def qcpo_reference(params, observation):
    T, B, D = observation.shape
    A = params["wmu"].shape[1]
    Q = params["wc"].shape[1]
    hp = jax.lax.Precision.HIGHEST

    x = observation.reshape(T * B, D)
    var = jnp.maximum(params["obs_var"], 1e-6)
    x = jnp.clip((x - params["obs_mean"]) / jnp.sqrt(var), -10.0, 10.0)
    h1 = jnp.tanh(jnp.dot(x, params["w1"], precision=hp) + params["b1"])
    h2 = jnp.tanh(jnp.dot(h1, params["w2"], precision=hp) + params["b2"])

    mu = jnp.tanh(jnp.dot(h2, params["wmu"], precision=hp) + params["bmu"])
    r_value = jnp.dot(h2, params["wv"], precision=hp) + params["bv"]
    c_dist = jnp.exp(jnp.dot(h2, params["wc"], precision=hp) + params["bc"])
    c_w_alpha = 4.0 * jax.nn.sigmoid(jnp.dot(h2, params["wa"], precision=hp) + params["ba"])
    c_w_beta = jnp.exp(jnp.dot(h2, params["wb"], precision=hp) + params["bb"])

    log_std = jnp.broadcast_to(params["log_std"].reshape(1, 1, A), (T, B, A))
    value = {
        "r_value": r_value.reshape(T, B),
        "c_dist": c_dist.reshape(T, B, Q),
        "c_w_alpha": c_w_alpha.reshape(T, B),
        "c_w_beta": c_w_beta.reshape(T, B),
    }
    return mu.reshape(T, B, A), log_std, value


# --------------------------- deterministic params -----------------------------
def make_params(key, d_obs, hidden, action_size, n_quantile, init_log_std=0.0):
    keys = jax.random.split(key, 8)

    def lin(k, fan_in, fan_out):
        kw, kb = jax.random.split(k)
        bound = 1.0 / jnp.sqrt(fan_in)
        w = jax.random.uniform(kw, (fan_in, fan_out), jnp.float32, -bound, bound)
        b = jax.random.uniform(kb, (1, fan_out), jnp.float32, -bound, bound)
        return w, b

    w1, b1 = lin(keys[0], d_obs, hidden)
    w2, b2 = lin(keys[1], hidden, hidden)
    wmu, bmu = lin(keys[2], hidden, action_size)
    wv, bv = lin(keys[3], hidden, 1)
    wc, bc = lin(keys[4], hidden, n_quantile)
    wa, ba = lin(keys[5], hidden, 1)
    wb, bb = lin(keys[6], hidden, 1)

    return {
        # RunningMeanStdModel starts at mean=0, var=1
        "obs_mean": jnp.zeros((1, d_obs), jnp.float32),
        "obs_var": jnp.ones((1, d_obs), jnp.float32),
        "w1": w1, "b1": b1, "w2": w2, "b2": b2,
        "wmu": wmu, "bmu": bmu,
        "wv": wv, "bv": bv,
        "wc": wc, "bc": bc,
        "wa": wa, "ba": ba,
        "wb": wb, "bb": bb,
        "log_std": init_log_std * jnp.ones((1, action_size), jnp.float32),
    }


# --------------------------------- main ---------------------------------------
if __name__ == "__main__":
    T, B = 2, 4
    D_OBS = 32
    HIDDEN = 32
    ACTION_SIZE = 4
    N_QUANTILE = 8

    key = jax.random.PRNGKey(0)
    k_obs, k_act, k_rew, k_par = jax.random.split(key, 4)

    observation = jax.random.normal(k_obs, (T, B, D_OBS), jnp.float32)
    prev_action = jax.random.normal(k_act, (T, B, ACTION_SIZE), jnp.float32)  # unused (no LSTM)
    prev_reward = jax.random.normal(k_rew, (T, B), jnp.float32)               # unused (no LSTM)

    params = make_params(k_par, D_OBS, HIDDEN, ACTION_SIZE, N_QUANTILE)

    # --- f32 path: verify against pure-JAX reference ---
    fwd_f32 = jax.jit(functools.partial(qcpo_forward, compute_dtype=jnp.float32))
    mu, log_std, value = fwd_f32(params, observation, prev_action, prev_reward)
    jax.block_until_ready((mu, log_std, value))

    ref_mu, ref_ls, ref_val = qcpo_reference(params, observation)
    checks = [
        (mu, ref_mu), (log_std, ref_ls),
        (value["r_value"], ref_val["r_value"]),
        (value["c_dist"], ref_val["c_dist"]),
        (value["c_w_alpha"], ref_val["c_w_alpha"]),
        (value["c_w_beta"], ref_val["c_w_beta"]),
    ]
    for got, want in checks:
        assert got.shape == want.shape, (got.shape, want.shape)
        assert bool(jnp.allclose(got, want, atol=2e-2, rtol=2e-2)), "mismatch vs reference"

    assert mu.shape == (T, B, ACTION_SIZE)
    assert log_std.shape == (T, B, ACTION_SIZE)
    assert value["r_value"].shape == (T, B)
    assert value["c_dist"].shape == (T, B, N_QUANTILE)
    assert value["c_w_alpha"].shape == (T, B)
    assert value["c_w_beta"].shape == (T, B)

    # --- bf16 path at a multi-tile shape: exercises row pipelining / parallel grid ---
    T2, B2 = 64, 32
    obs_big = jax.random.normal(jax.random.PRNGKey(1), (T2, B2, D_OBS), jnp.float32)
    fwd_bf16 = jax.jit(functools.partial(qcpo_forward, tile_n=512,
                                         compute_dtype=jnp.bfloat16))
    mu2, ls2, val2 = fwd_bf16(params, obs_big)
    jax.block_until_ready((mu2, ls2, val2))
    assert mu2.shape == (T2, B2, ACTION_SIZE)
    assert val2["c_dist"].shape == (T2, B2, N_QUANTILE)

    print("KERNEL_OK")
</pallas_src>

<mosaic_0001>
module attributes {stable_mosaic.version = 11 : i64} {
  func.func @_qcpo_kernel(%arg0: i32, %arg1: memref<8x32xf32, #tpu.memory_space<vmem>>, %arg2: memref<1x32xf32, #tpu.memory_space<vmem>>, %arg3: memref<1x32xf32, #tpu.memory_space<vmem>>, %arg4: memref<32x32xf32, #tpu.memory_space<vmem>>, %arg5: memref<1x32xf32, #tpu.memory_space<vmem>>, %arg6: memref<32x32xf32, #tpu.memory_space<vmem>>, %arg7: memref<1x32xf32, #tpu.memory_space<vmem>>, %arg8: memref<32x128xf32, #tpu.memory_space<vmem>>, %arg9: memref<1x128xf32, #tpu.memory_space<vmem>>, %arg10: memref<8x128xf32, #tpu.memory_space<vmem>>) attributes {dimension_semantics = [#tpu.dimension_semantics<parallel>], iteration_bounds = array<i64: 1>, scalar_prefetch = 0 : i64, scratch_operands = 0 : i64, tpu.core_type = #tpu.core_type<tc>, window_params = [{transform_indices = @transform_0, window_bounds = array<i64: 8, 32>}, {pipeline_mode = #tpu.pipeline_mode<synchronous>, transform_indices = @transform_1, window_bounds = array<i64: 1, 32>}, {pipeline_mode = #tpu.pipeline_mode<synchronous>, transform_indices = @transform_2, window_bounds = array<i64: 1, 32>}, {pipeline_mode = #tpu.pipeline_mode<synchronous>, transform_indices = @transform_3, window_bounds = array<i64: 32, 32>}, {pipeline_mode = #tpu.pipeline_mode<synchronous>, transform_indices = @transform_4, window_bounds = array<i64: 1, 32>}, {pipeline_mode = #tpu.pipeline_mode<synchronous>, transform_indices = @transform_5, window_bounds = array<i64: 32, 32>}, {pipeline_mode = #tpu.pipeline_mode<synchronous>, transform_indices = @transform_6, window_bounds = array<i64: 1, 32>}, {pipeline_mode = #tpu.pipeline_mode<synchronous>, transform_indices = @transform_7, window_bounds = array<i64: 32, 128>}, {pipeline_mode = #tpu.pipeline_mode<synchronous>, transform_indices = @transform_8, window_bounds = array<i64: 1, 128>}, {transform_indices = @transform_9, window_bounds = array<i64: 8, 128>}]} {
    %c0 = arith.constant 0 : index
    %c0_0 = arith.constant 0 : index
    %0 = vector.load %arg1[%c0, %c0_0] : memref<8x32xf32, #tpu.memory_space<vmem>>, vector<8x32xf32>
    %c0_1 = arith.constant 0 : index
    %c0_2 = arith.constant 0 : index
    %1 = vector.load %arg2[%c0_1, %c0_2] : memref<1x32xf32, #tpu.memory_space<vmem>>, vector<1x32xf32>
    %2 = vector.broadcast %1 : vector<1x32xf32> to vector<8x32xf32>
    %3 = arith.subf %0, %2 : vector<8x32xf32>
    %c0_3 = arith.constant 0 : index
    %c0_4 = arith.constant 0 : index
    %4 = vector.load %arg3[%c0_3, %c0_4] : memref<1x32xf32, #tpu.memory_space<vmem>>, vector<1x32xf32>
    %5 = vector.broadcast %4 : vector<1x32xf32> to vector<8x32xf32>
    %6 = arith.mulf %3, %5 : vector<8x32xf32>
    %cst = arith.constant -1.000000e+01 : f32
    %cst_5 = arith.constant 1.000000e+01 : f32
    %7 = vector.broadcast %cst : f32 to vector<8x32xf32>
    %8 = arith.maximumf %7, %6 : vector<8x32xf32>
    %9 = vector.broadcast %cst_5 : f32 to vector<8x32xf32>
    %10 = arith.minimumf %9, %8 : vector<8x32xf32>
    %c0_6 = arith.constant 0 : index
    %c0_7 = arith.constant 0 : index
    %11 = vector.load %arg4[%c0_6, %c0_7] : memref<32x32xf32, #tpu.memory_space<vmem>>, vector<32x32xf32>
    %cst_8 = arith.constant dense<0.000000e+00> : vector<8x32xf32>
    %12 = tpu.matmul %10, %11, %cst_8 {dimension_numbers = #tpu.dot_dimension_numbers<[1], [0], [0], [1], [0, 0, 1, 1], [], []>} : vector<8x32xf32>, vector<32x32xf32>, vector<8x32xf32> -> vector<8x32xf32>
    %c0_9 = arith.constant 0 : index
    %c0_10 = arith.constant 0 : index
    %13 = vector.load %arg5[%c0_9, %c0_10] : memref<1x32xf32, #tpu.memory_space<vmem>>, vector<1x32xf32>
    %14 = vector.broadcast %13 : vector<1x32xf32> to vector<8x32xf32>
    %15 = arith.addf %12, %14 : vector<8x32xf32>
    %16 = math.tanh %15 : vector<8x32xf32>
    %c0_11 = arith.constant 0 : index
    %c0_12 = arith.constant 0 : index
    %17 = vector.load %arg6[%c0_11, %c0_12] : memref<32x32xf32, #tpu.memory_space<vmem>>, vector<32x32xf32>
    %cst_13 = arith.constant dense<0.000000e+00> : vector<8x32xf32>
    %18 = tpu.matmul %16, %17, %cst_13 {dimension_numbers = #tpu.dot_dimension_numbers<[1], [0], [0], [1], [0, 0, 1, 1], [], []>} : vector<8x32xf32>, vector<32x32xf32>, vector<8x32xf32> -> vector<8x32xf32>
    %c0_14 = arith.constant 0 : index
    %c0_15 = arith.constant 0 : index
    %19 = vector.load %arg7[%c0_14, %c0_15] : memref<1x32xf32, #tpu.memory_space<vmem>>, vector<1x32xf32>
    %20 = vector.broadcast %19 : vector<1x32xf32> to vector<8x32xf32>
    %21 = arith.addf %18, %20 : vector<8x32xf32>
    %22 = math.tanh %21 : vector<8x32xf32>
    %c0_16 = arith.constant 0 : index
    %c0_17 = arith.constant 0 : index
    %23 = vector.load %arg8[%c0_16, %c0_17] : memref<32x128xf32, #tpu.memory_space<vmem>>, vector<32x128xf32>
    %cst_18 = arith.constant dense<0.000000e+00> : vector<8x128xf32>
    %24 = tpu.matmul %22, %23, %cst_18 {dimension_numbers = #tpu.dot_dimension_numbers<[1], [0], [0], [1], [0, 0, 1, 1], [], []>} : vector<8x32xf32>, vector<32x128xf32>, vector<8x128xf32> -> vector<8x128xf32>
    %c0_19 = arith.constant 0 : index
    %c0_20 = arith.constant 0 : index
    %25 = vector.load %arg9[%c0_19, %c0_20] : memref<1x128xf32, #tpu.memory_space<vmem>>, vector<1x128xf32>
    %26 = vector.broadcast %25 : vector<1x128xf32> to vector<8x128xf32>
    %27 = arith.addf %24, %26 : vector<8x128xf32>
    %28 = tpu.iota {dimensions = array<i32: 1>} : vector<8x128xi32>
    %29 = math.tanh %27 : vector<8x128xf32>
    %30 = math.exp %27 : vector<8x128xf32>
    %31 = arith.negf %27 : vector<8x128xf32>
    %32 = math.exp %31 : vector<8x128xf32>
    %cst_21 = arith.constant 1.000000e+00 : f32
    %33 = vector.broadcast %cst_21 : f32 to vector<8x128xf32>
    %34 = arith.addf %33, %32 : vector<8x128xf32>
    %35 = arith.divf %33, %34 : vector<8x128xf32>
    %cst_22 = arith.constant 4.000000e+00 : f32
    %36 = vector.broadcast %cst_22 : f32 to vector<8x128xf32>
    %37 = arith.mulf %36, %35 : vector<8x128xf32>
    %c4_i32 = arith.constant 4 : i32
    %38 = vector.broadcast %c4_i32 : i32 to vector<8x128xi32>
    %39 = arith.cmpi slt, %28, %38 : vector<8x128xi32>
    %c4_i32_23 = arith.constant 4 : i32
    %40 = vector.broadcast %c4_i32_23 : i32 to vector<8x128xi32>
    %41 = arith.cmpi eq, %28, %40 : vector<8x128xi32>
    %c13_i32 = arith.constant 13 : i32
    %42 = vector.broadcast %c13_i32 : i32 to vector<8x128xi32>
    %43 = arith.cmpi slt, %28, %42 : vector<8x128xi32>
    %c13_i32_24 = arith.constant 13 : i32
    %44 = vector.broadcast %c13_i32_24 : i32 to vector<8x128xi32>
    %45 = arith.cmpi eq, %28, %44 : vector<8x128xi32>
    %46 = arith.select %45, %37, %30 : vector<8x128xi1>, vector<8x128xf32>
    %47 = arith.select %43, %30, %46 : vector<8x128xi1>, vector<8x128xf32>
    %48 = arith.select %41, %27, %47 : vector<8x128xi1>, vector<8x128xf32>
    %49 = arith.select %39, %29, %48 : vector<8x128xi1>, vector<8x128xf32>
    %c0_25 = arith.constant 0 : index
    %c0_26 = arith.constant 0 : index
    %50 = vector.load %arg10[%c0_25, %c0_26] : memref<8x128xf32, #tpu.memory_space<vmem>>, vector<8x128xf32>
    tpu.vector_store %arg10[%c0_25, %c0_26], %49 {strides = array<i32>} : memref<8x128xf32, #tpu.memory_space<vmem>>, vector<8x128xf32>,
    return
  }
  func.func @transform_0(%arg0: i32) -> (i32, i32) {
    %c0_i32 = arith.constant 0 : i32
    %c0_i32_0 = arith.constant 0 : i32
    return %arg0, %c0_i32 : i32, i32
  }
  func.func @transform_1(%arg0: i32) -> (i32, i32) {
    %c0_i32 = arith.constant 0 : i32
    %c0_i32_0 = arith.constant 0 : i32
    %c0_i32_1 = arith.constant 0 : i32
    return %c0_i32, %c0_i32_0 : i32, i32
  }
  func.func @transform_2(%arg0: i32) -> (i32, i32) {
    %c0_i32 = arith.constant 0 : i32
    %c0_i32_0 = arith.constant 0 : i32
    %c0_i32_1 = arith.constant 0 : i32
    return %c0_i32, %c0_i32_0 : i32, i32
  }
  func.func @transform_3(%arg0: i32) -> (i32, i32) {
    %c0_i32 = arith.constant 0 : i32
    %c0_i32_0 = arith.constant 0 : i32
    %c0_i32_1 = arith.constant 0 : i32
    return %c0_i32, %c0_i32_0 : i32, i32
  }
  func.func @transform_4(%arg0: i32) -> (i32, i32) {
    %c0_i32 = arith.constant 0 : i32
    %c0_i32_0 = arith.constant 0 : i32
    %c0_i32_1 = arith.constant 0 : i32
    return %c0_i32, %c0_i32_0 : i32, i32
  }
  func.func @transform_5(%arg0: i32) -> (i32, i32) {
    %c0_i32 = arith.constant 0 : i32
    %c0_i32_0 = arith.constant 0 : i32
    %c0_i32_1 = arith.constant 0 : i32
    return %c0_i32, %c0_i32_0 : i32, i32
  }
  func.func @transform_6(%arg0: i32) -> (i32, i32) {
    %c0_i32 = arith.constant 0 : i32
    %c0_i32_0 = arith.constant 0 : i32
    %c0_i32_1 = arith.constant 0 : i32
    return %c0_i32, %c0_i32_0 : i32, i32
  }
  func.func @transform_7(%arg0: i32) -> (i32, i32) {
    %c0_i32 = arith.constant 0 : i32
    %c0_i32_0 = arith.constant 0 : i32
    %c0_i32_1 = arith.constant 0 : i32
    return %c0_i32, %c0_i32_0 : i32, i32
  }
  func.func @transform_8(%arg0: i32) -> (i32, i32) {
    %c0_i32 = arith.constant 0 : i32
    %c0_i32_0 = arith.constant 0 : i32
    %c0_i32_1 = arith.constant 0 : i32
    return %c0_i32, %c0_i32_0 : i32, i32
  }
  func.func @transform_9(%arg0: i32) -> (i32, i32) {
    %c0_i32 = arith.constant 0 : i32
    %c0_i32_0 = arith.constant 0 : i32
    return %arg0, %c0_i32 : i32, i32
  }
}

</mosaic_0001>

<llo_original>
// kernel: squeeze.3
$region0: #{squeeze.3}
  %s0 = inlined_call_operand.vmem [shape: f32[8], index: 0, kind: input, shape index: {}]
  %s1 = inlined_call_operand.hbm [shape: f32[2,4], index: 1, kind: output, shape index: {}]
  $region1: #{squeeze.3} parent=0
    #allocation0 [shape = 'u8[1024]{0}', space=vmem, size = 0x400, scoped, tag = 'operand span for operand 1']
    #allocation1 [shape = 's32[1]{0}', space=sflag, size = 0x4, scoped, tag = 'scoped memory for squeeze.3']
    #allocation2 [shape = 'u8[4096]{0}', space=vmem, size = 0x1000, scoped, tag = 'scoped mem for output reshape']
    #allocation3 [shape = 'u8[4096]{0}', space=vmem, size = 0x1000, scoped, tag = 'scoped mem for input reshape']
    %2 = vsyncpa [#allocation1], 0
    %s4 = sshllo.u32 0, 1
    %v5 = vld [vmem:[%s0] sm:%s4]
    %6 = vst [vmem:[#allocation3] sm:%s4] %v5
    %v7 = vld [vmem:[#allocation3] sm:$0x1]
    %vm8 = vcmask 31744
    %9 = vst.msk [vmem:[#allocation2] sm:$0x1] %vm8, %v7
    %v10 = vld [vmem:[#allocation3] sm:$0x1]
    %11 = vrot.lane.b32.xlu0 %v10, 124
    %v12 = vpop.permute.xlu0 %11
    %vm13 = vcmask 31744
    %s14 = scalar_lea.vmem [#allocation2], 1
    %15 = vst.msk [vmem:[%s14] sm:$0x1] %vm13, %v12
    %s17 = sshllo.u32 0, 2
    %v19 = vld [vmem:[#allocation2] sm:%s17]
    %s20 = sshllo.u32 0, 2
    %21 = vst [vmem:[#allocation0] sm:%s20] %v19
    %s23 = ssub.s32 32, 32
    %24 = vsyncadd [#allocation1], %s23
    %s26 = sshll.u32 [#allocation0], 4
    %s27 = int_to_ptr.vmem [resolvable:$true] %s26
    %29 = dma.vmem_to_hbm [thread:$0]  %s27, 32, %s1, [#allocation1]
    %30 = dma.done [#allocation1], 32
    %31 = vsyncpa [#allocation1], 1

// kernel: qcpo_forward.1
$region0: #{qcpo_forward.1}
  #allocation0 [shape = 'u32[]', space=smem, size = 0x4, offset = 0x4, fixed_abs, tag = 'smem constant byte address 0x4 - core index']
  #allocation1 [shape = 'u32[144,128]{1,0:T(1,128)}', space=vmem, size = 0x12000, scoped, tag = 'internal scratch']
  %s0 = inlined_call_operand.vmem [shape: f32[8,32], index: 0, kind: input, shape index: {}]
  %s1 = inlined_call_operand.vmem [shape: f32[1,32], index: 1, kind: input, shape index: {}]
  %s2 = inlined_call_operand.vmem [shape: f32[1,32], index: 2, kind: input, shape index: {}]
  %s3 = inlined_call_operand.vmem [shape: f32[32,32], index: 3, kind: input, shape index: {}]
  %s4 = inlined_call_operand.vmem [shape: f32[1,32], index: 4, kind: input, shape index: {}]
  %s5 = inlined_call_operand.vmem [shape: f32[32,32], index: 5, kind: input, shape index: {}]
  %s6 = inlined_call_operand.vmem [shape: f32[1,32], index: 6, kind: input, shape index: {}]
  %s7 = inlined_call_operand.vmem [shape: f32[32,128], index: 7, kind: input, shape index: {}]
  %s8 = inlined_call_operand.vmem [shape: f32[1,128], index: 8, kind: input, shape index: {}]
  %s9 = inlined_call_operand.vmem [shape: f32[8,128], index: 9, kind: output, shape index: {}]
  %s10 = sld [smem:[#allocation0]]
  $region46: #{qcpo_forward.1} parent=0
    _
  %s12 = ssub.s32 1, %s10
  %s13 = scalar_select 0, %s12, %s10
  // Predicated region
  $region2: #{qcpo_forward.1} parent=0 // pred_check
    _
  $region3: #{qcpo_forward.1} parent=0 // pred_check_branch
    %15 = sbr.rel (0) target = $region5
  $region4: #{qcpo_forward.1} parent=0 // pred_region
    _
  $region5: #{qcpo_forward.1} parent=0 // pred_fallthru
    _
  // Predicated region
  $region6: #{qcpo_forward.1} parent=0 // pred_check
    _
  $region7: #{qcpo_forward.1} parent=0 // pred_check_branch
    %17 = sbr.rel (0) target = $region9
  $region8: #{qcpo_forward.1} parent=0 // pred_region
    _
  $region9: #{qcpo_forward.1} parent=0 // pred_fallthru
    _
  // Predicated region
  $region10: #{qcpo_forward.1} parent=0 // pred_check
    _
  $region11: #{qcpo_forward.1} parent=0 // pred_check_branch
    %19 = sbr.rel (0) target = $region13
  $region12: #{qcpo_forward.1} parent=0 // pred_region
    _
  $region13: #{qcpo_forward.1} parent=0 // pred_fallthru
    _
  // Predicated region
  $region14: #{qcpo_forward.1} parent=0 // pred_check
    _
  $region15: #{qcpo_forward.1} parent=0 // pred_check_branch
    %21 = sbr.rel (0) target = $region17
  $region16: #{qcpo_forward.1} parent=0 // pred_region
    _
  $region17: #{qcpo_forward.1} parent=0 // pred_fallthru
    _
  // Predicated region
  $region18: #{qcpo_forward.1} parent=0 // pred_check
    _
  $region19: #{qcpo_forward.1} parent=0 // pred_check_branch
    %23 = sbr.rel (0) target = $region21
  $region20: #{qcpo_forward.1} parent=0 // pred_region
    _
  $region21: #{qcpo_forward.1} parent=0 // pred_fallthru
    _
  // Predicated region
  $region22: #{qcpo_forward.1} parent=0 // pred_check
    _
  $region23: #{qcpo_forward.1} parent=0 // pred_check_branch
    %25 = sbr.rel (0) target = $region25
  $region24: #{qcpo_forward.1} parent=0 // pred_region
    _
  $region25: #{qcpo_forward.1} parent=0 // pred_fallthru
    _
  // Predicated region
  $region26: #{qcpo_forward.1} parent=0 // pred_check
    _
  $region27: #{qcpo_forward.1} parent=0 // pred_check_branch
    %27 = sbr.rel (0) target = $region29
  $region28: #{qcpo_forward.1} parent=0 // pred_region
    _
  $region29: #{qcpo_forward.1} parent=0 // pred_fallthru
    _
  // Predicated region
  $region30: #{qcpo_forward.1} parent=0 // pred_check
    _
  $region31: #{qcpo_forward.1} parent=0 // pred_check_branch
    %29 = sbr.rel (0) target = $region33
  $region32: #{qcpo_forward.1} parent=0 // pred_region
    _
  $region33: #{qcpo_forward.1} parent=0 // pred_fallthru
    _
  // Predicated region
  $region34: #{qcpo_forward.1} parent=0 // pred_check
    _
  $region35: #{qcpo_forward.1} parent=0 // pred_check_branch
    %31 = sbr.rel (0) target = $region37
  $region36: #{qcpo_forward.1} parent=0 // pred_region
    _
  $region37: #{qcpo_forward.1} parent=0 // pred_fallthru
    _
  %v32 = vld [vmem:[%s0] sm:$0xff]
  %v33 = vld [vmem:[%s1] sm:$0x1]
  %v35 = vlaneseq
  %v36 = vshrl.u32 %v35, 7
  %v37 = vsub.s32 0, %v36
  %v38 = vrot.slane %v33, %v37
  %v40 = vsub.f32 %v32, %v38
  %v41 = vld [vmem:[%s2] sm:$0x1]
  %v43 = vlaneseq
  %v44 = vshrl.u32 %v43, 7
  %v45 = vsub.s32 0, %v44
  %v46 = vrot.slane %v41, %v45
  %v48 = vmul.f32 %v40, %v46
  %v49 = vmax.f32 %v48, -10.0
  %v50 = vmin.f32 %v49, 10.0
  %v51 = vld [vmem:[%s3] sm:$0xff]
  %v52 = vld [vmem:[%s3 + $0x8] sm:$0xff]
  %v53 = vld [vmem:[%s3 + $0x10] sm:$0xff]
  %v54 = vld [vmem:[%s3 + $0x18] sm:$0xff]
  %v55 = vld [vmem:[%s4] sm:$0x1]
  %v57 = vlaneseq
  %v58 = vshrl.u32 %v57, 7
  %v59 = vsub.s32 0, %v58
  %v60 = vrot.slane %v55, %v59
  %vm62 = vcmask 261120
  %v64 = vsel %vm62, %v50, 0
  %66 = vmatprep.subr.mxu0 0.0
  %67 = vmatpush1.msra.mxu0 %v51
  %68 = vmatprep.subr.mxu0 0.0
  %69 = vmatpush1.msra.mxu0 %v52
  %70 = vmatprep.subr.mxu0 0.0
  %71 = vmatpush1.msra.mxu0 %v53
  %72 = vmatprep.subr.mxu0 0.0
  %73 = vmatpush1.msra.mxu0 %v54
  %74 = vmatprep.subr.mxu0 0.0
  %75 = vmatpush1.msra.mxu0 0.0
  %76 = vmatprep.subr.mxu0 0.0
  %77 = vmatpush1.msra.mxu0 0.0
  %78 = vmatprep.subr.mxu0 0.0
  %79 = vmatpush1.msra.mxu0 0.0
  %80 = vmatprep.subr.mxu0 0.0
  %81 = vmatpush1.msra.mxu0 0.0
  %82 = vmatprep.subr.mxu0 0.0
  %83 = vmatpush1.msra.mxu0 0.0
  %84 = vmatprep.subr.mxu0 0.0
  %85 = vmatpush1.msra.mxu0 0.0
  %86 = vmatprep.subr.mxu0 0.0
  %87 = vmatpush1.msra.mxu0 0.0
  %88 = vmatprep.subr.mxu0 0.0
  %89 = vmatpush1.msra.mxu0 0.0
  %90 = vmatprep.subr.mxu0 0.0
  %91 = vmatpush1.msra.mxu0 0.0
  %92 = vmatprep.subr.mxu0 0.0
  %93 = vmatpush1.msra.mxu0 0.0
  %94 = vmatprep.subr.mxu0 0.0
  %95 = vmatpush1.msra.mxu0 0.0
  %96 = vmatprep.subr.mxu0 0.0
  %97 = vmatpush1.msra.mxu0 0.0
  %98 = vmatprep.subr.mxu0 0.0
  %99 = vmatpush1.msra.mxu0 0.0
  %100 = vmatprep.subr.mxu0 0.0
  %101 = vmatpush1.msra.mxu0 0.0
  %102 = vmatprep.subr.mxu0 0.0
  %103 = vmatpush1.msra.mxu0 0.0
  %104 = vmatprep.subr.mxu0 0.0
  %105 = vmatpush1.msra.mxu0 0.0
  %106 = vmatprep.subr.mxu0 0.0
  %107 = vmatpush1.msra.mxu0 0.0
  %108 = vmatprep.subr.mxu0 0.0
  %109 = vmatpush1.msra.mxu0 0.0
  %110 = vmatprep.subr.mxu0 0.0
  %111 = vmatpush1.msra.mxu0 0.0
  %112 = vmatprep.subr.mxu0 0.0
  %113 = vmatpush1.msra.mxu0 0.0
  %114 = vmatprep.subr.mxu0 0.0
  %115 = vmatpush1.msra.mxu0 0.0
  %116 = vmatprep.subr.mxu0 0.0
  %117 = vmatpush1.msra.mxu0 0.0
  %118 = vmatprep.subr.mxu0 0.0
  %119 = vmatpush1.msra.mxu0 0.0
  %120 = vmatprep.subr.mxu0 0.0
  %121 = vmatpush1.msra.mxu0 0.0
  %122 = vmatprep.subr.mxu0 0.0
  %123 = vmatpush1.msra.mxu0 0.0
  %124 = vmatprep.subr.mxu0 0.0
  %125 = vmatpush1.msra.mxu0 0.0
  %126 = vmatprep.subr.mxu0 0.0
  %127 = vmatpush1.msra.mxu0 0.0
  %128 = vmatprep.subr.mxu0 0.0
  %129 = vmatpush1.msra.mxu0 0.0
  %130 = vmatprep.mubr.f32.mxu0 0.0
  %131 = vmatmul.mubr.f32.gmra.mrb[0].mxu0 %v64
  %v132 = vpop.f32.mrb[0].mxu0
  %v133 = vadd.f32 %v60, %v132
  %v134 = vpop.f32.mrb[0].mxu0
  %135 = vdwg.mxu0
  %v136 = vtanh.pop %v133
  %v137 = vld [vmem:[%s5] sm:$0xff]
  %v138 = vld [vmem:[%s5 + $0x8] sm:$0xff]
  %v139 = vld [vmem:[%s5 + $0x10] sm:$0xff]
  %v140 = vld [vmem:[%s5 + $0x18] sm:$0xff]
  %v141 = vld [vmem:[%s6] sm:$0x1]
  %v143 = vlaneseq
  %v144 = vshrl.u32 %v143, 7
  %v145 = vsub.s32 0, %v144
  %v146 = vrot.slane %v141, %v145
  %v149 = vsel %vm62, %v136, 0
  %151 = vmatprep.subr.mxu0 0.0
  %152 = vmatpush1.msra.mxu0 %v137
  %153 = vmatprep.subr.mxu0 0.0
  %154 = vmatpush1.msra.mxu0 %v138
  %155 = vmatprep.subr.mxu0 0.0
  %156 = vmatpush1.msra.mxu0 %v139
  %157 = vmatprep.subr.mxu0 0.0
  %158 = vmatpush1.msra.mxu0 %v140
  %159 = vmatprep.subr.mxu0 0.0
  %160 = vmatpush1.msra.mxu0 0.0
  %161 = vmatprep.subr.mxu0 0.0
  %162 = vmatpush1.msra.mxu0 0.0
  %163 = vmatprep.subr.mxu0 0.0
  %164 = vmatpush1.msra.mxu0 0.0
  %165 = vmatprep.subr.mxu0 0.0
  %166 = vmatpush1.msra.mxu0 0.0
  %167 = vmatprep.subr.mxu0 0.0
  %168 = vmatpush1.msra.mxu0 0.0
  %169 = vmatprep.subr.mxu0 0.0
  %170 = vmatpush1.msra.mxu0 0.0
  %171 = vmatprep.subr.mxu0 0.0
  %172 = vmatpush1.msra.mxu0 0.0
  %173 = vmatprep.subr.mxu0 0.0
  %174 = vmatpush1.msra.mxu0 0.0
  %175 = vmatprep.subr.mxu0 0.0
  %176 = vmatpush1.msra.mxu0 0.0
  %177 = vmatprep.subr.mxu0 0.0
  %178 = vmatpush1.msra.mxu0 0.0
  %179 = vmatprep.subr.mxu0 0.0
  %180 = vmatpush1.msra.mxu0 0.0
  %181 = vmatprep.subr.mxu0 0.0
  %182 = vmatpush1.msra.mxu0 0.0
  %183 = vmatprep.subr.mxu0 0.0
  %184 = vmatpush1.msra.mxu0 0.0
  %185 = vmatprep.subr.mxu0 0.0
  %186 = vmatpush1.msra.mxu0 0.0
  %187 = vmatprep.subr.mxu0 0.0
  %188 = vmatpush1.msra.mxu0 0.0
  %189 = vmatprep.subr.mxu0 0.0
  %190 = vmatpush1.msra.mxu0 0.0
  %191 = vmatprep.subr.mxu0 0.0
  %192 = vmatpush1.msra.mxu0 0.0
  %193 = vmatprep.subr.mxu0 0.0
  %194 = vmatpush1.msra.mxu0 0.0
  %195 = vmatprep.subr.mxu0 0.0
  %196 = vmatpush1.msra.mxu0 0.0
  %197 = vmatprep.subr.mxu0 0.0
  %198 = vmatpush1.msra.mxu0 0.0
  %199 = vmatprep.subr.mxu0 0.0
  %200 = vmatpush1.msra.mxu0 0.0
  %201 = vmatprep.subr.mxu0 0.0
  %202 = vmatpush1.msra.mxu0 0.0
  %203 = vmatprep.subr.mxu0 0.0
  %204 = vmatpush1.msra.mxu0 0.0
  %205 = vmatprep.subr.mxu0 0.0
  %206 = vmatpush1.msra.mxu0 0.0
  %207 = vmatprep.subr.mxu0 0.0
  %208 = vmatpush1.msra.mxu0 0.0
  %209 = vmatprep.subr.mxu0 0.0
  %210 = vmatpush1.msra.mxu0 0.0
  %211 = vmatprep.subr.mxu0 0.0
  %212 = vmatpush1.msra.mxu0 0.0
  %213 = vmatprep.subr.mxu0 0.0
  %214 = vmatpush1.msra.mxu0 0.0
  %215 = vmatprep.mubr.f32.mxu0 0.0
  %216 = vmatmul.mubr.f32.gmra.mrb[0].mxu0 %v149
  %v217 = vpop.f32.mrb[0].mxu0
  %v218 = vadd.f32 %v146, %v217
  %v219 = vpop.f32.mrb[0].mxu0
  %220 = vdwg.mxu0
  %v221 = vtanh.pop %v218
  %v222 = vld [vmem:[%s7] sm:$0xff]
  %v223 = vld [vmem:[%s7 + $0x8] sm:$0xff]
  %v224 = vld [vmem:[%s7 + $0x10] sm:$0xff]
  %v225 = vld [vmem:[%s7 + $0x18] sm:$0xff]
  %v226 = vld [vmem:[%s8] sm:$0x1]
  %v228 = vlaneseq
  %v229 = vshrl.u32 %v228, 7
  %v230 = vsub.s32 0, %v229
  %v231 = vrot.slane %v226, %v230
  %v234 = vsel %vm62, %v221, 0
  %236 = vmatprep.subr.mxu0 0.0
  %237 = vmatpush1.msra.mxu0 %v222
  %238 = vmatprep.subr.mxu0 0.0
  %239 = vmatpush1.msra.mxu0 %v223
  %240 = vmatprep.subr.mxu0 0.0
  %241 = vmatpush1.msra.mxu0 %v224
  %242 = vmatprep.subr.mxu0 0.0
  %243 = vmatpush1.msra.mxu0 %v225
  %244 = vmatprep.subr.mxu0 0.0
  %245 = vmatpush1.msra.mxu0 0.0
  %246 = vmatprep.subr.mxu0 0.0
  %247 = vmatpush1.msra.mxu0 0.0
  %248 = vmatprep.subr.mxu0 0.0
  %249 = vmatpush1.msra.mxu0 0.0
  %250 = vmatprep.subr.mxu0 0.0
  %251 = vmatpush1.msra.mxu0 0.0
  %252 = vmatprep.subr.mxu0 0.0
  %253 = vmatpush1.msra.mxu0 0.0
  %254 = vmatprep.subr.mxu0 0.0
  %255 = vmatpush1.msra.mxu0 0.0
  %256 = vmatprep.subr.mxu0 0.0
  %257 = vmatpush1.msra.mxu0 0.0
  %258 = vmatprep.subr.mxu0 0.0
  %259 = vmatpush1.msra.mxu0 0.0
  %260 = vmatprep.subr.mxu0 0.0
  %261 = vmatpush1.msra.mxu0 0.0
  %262 = vmatprep.subr.mxu0 0.0
  %263 = vmatpush1.msra.mxu0 0.0
  %264 = vmatprep.subr.mxu0 0.0
  %265 = vmatpush1.msra.mxu0 0.0
  %266 = vmatprep.subr.mxu0 0.0
  %267 = vmatpush1.msra.mxu0 0.0
  %268 = vmatprep.subr.mxu0 0.0
  %269 = vmatpush1.msra.mxu0 0.0
  %270 = vmatprep.subr.mxu0 0.0
  %271 = vmatpush1.msra.mxu0 0.0
  %272 = vmatprep.subr.mxu0 0.0
  %273 = vmatpush1.msra.mxu0 0.0
  %274 = vmatprep.subr.mxu0 0.0
  %275 = vmatpush1.msra.mxu0 0.0
  %276 = vmatprep.subr.mxu0 0.0
  %277 = vmatpush1.msra.mxu0 0.0
  %278 = vmatprep.subr.mxu0 0.0
  %279 = vmatpush1.msra.mxu0 0.0
  %280 = vmatprep.subr.mxu0 0.0
  %281 = vmatpush1.msra.mxu0 0.0
  %282 = vmatprep.subr.mxu0 0.0
  %283 = vmatpush1.msra.mxu0 0.0
  %284 = vmatprep.subr.mxu0 0.0
  %285 = vmatpush1.msra.mxu0 0.0
  %286 = vmatprep.subr.mxu0 0.0
  %287 = vmatpush1.msra.mxu0 0.0
  %288 = vmatprep.subr.mxu0 0.0
  %289 = vmatpush1.msra.mxu0 0.0
  %290 = vmatprep.subr.mxu0 0.0
  %291 = vmatpush1.msra.mxu0 0.0
  %292 = vmatprep.subr.mxu0 0.0
  %293 = vmatpush1.msra.mxu0 0.0
  %294 = vmatprep.subr.mxu0 0.0
  %295 = vmatpush1.msra.mxu0 0.0
  %296 = vmatprep.subr.mxu0 0.0
  %297 = vmatpush1.msra.mxu0 0.0
  %298 = vmatprep.subr.mxu0 0.0
  %299 = vmatpush1.msra.mxu0 0.0
  %300 = vmatprep.mubr.f32.mxu0 0.0
  %301 = vmatmul.mubr.f32.gmra.mrb[0].mxu0 %v234
  %v302 = vpop.f32.mrb[0].mxu0
  %v303 = vadd.f32 %v231, %v302
  %v304 = vpop.f32.mrb[0].mxu0
  %305 = vdwg.mxu0
  %v306 = vlaneseq
  %v307 = vand.u32 %v306, 127
  %v308 = vtanh.pop %v303
  %v309 = vmul.f32 %v303, 1.442695
  %v310 = vpow.pop %v309
  %v311 = vxor.u32 %v303, 2147483648
  %v312 = vmul.f32 %v311, 1.442695
  %v313 = vpow.pop %v312
  %v314 = vadd.f32 %v313, 1.0
  %v315 = vrcp.pop %v314
  %v316 = vmul.f32 1.0, %v315
  %v317 = vmul.f32 %v316, 4.0
  %vm318 = vcmp.lt.s32.totalorder %v307, 4
  %vm319 = vcmp.eq.s32.totalorder %v307, 4
  %vm320 = vcmp.lt.s32.totalorder %v307, 13
  %vm321 = vcmp.eq.s32.totalorder %v307, 13
  %v322 = vsel %vm321, %v317, %v310
  %v323 = vsel %vm320, %v310, %v322
  %v324 = vsel %vm319, %v303, %v323
  %v325 = vsel %vm318, %v308, %v324
  %326 = vst [vmem:[%s9] sm:$0xff] %v325
  // Predicated region
  $region38: #{qcpo_forward.1} parent=0 // pred_check
    _
  $region39: #{qcpo_forward.1} parent=0 // pred_check_branch
    %328 = sbr.rel (0) target = $region41
  $region40: #{qcpo_forward.1} parent=0 // pred_region
    _
  $region41: #{qcpo_forward.1} parent=0 // pred_fallthru
    _
  // Predicated region
  $region42: #{qcpo_forward.1} parent=0 // pred_check
    _
  $region43: #{qcpo_forward.1} parent=0 // pred_check_branch
    %330 = sbr.rel (0) target = $region45
  $region44: #{qcpo_forward.1} parent=0 // pred_region
    _
  $region45: #{qcpo_forward.1} parent=0 // pred_fallthru
    _

</llo_original>
